<compile_context>
chip_gen: v5e
topology: v5e:2x2
jax: 0.10.0
libtpu: 0.0.40
codegen_flags: <defaults>
</compile_context>

<pallas_src>
import math

import jax
import jax.numpy as jnp
from jax.experimental import pallas as pl
from jax.experimental.pallas import tpu as pltpu

_SQRT_2_OVER_PI = math.sqrt(2.0 / math.pi)
_INV_SQRT_2 = 1.0 / math.sqrt(2.0)


def _round_up(x, m):
    return (x + m - 1) // m * m


# ---------------------------------------------------------------------------
# Math helpers
# ---------------------------------------------------------------------------
def _gelu_exact(x):
    # PyTorch nn.GELU() default (erf form) — used by the pure-JAX reference.
    return 0.5 * x * (1.0 + jax.lax.erf(x * _INV_SQRT_2))


def _gelu_tanh(x):
    # tanh-approximate GELU: routes through the EUP (its own bundle slot)
    # instead of a long erf VALU polynomial.  Tiny deviation vs exact GELU.
    return 0.5 * x * (1.0 + jnp.tanh(_SQRT_2_OVER_PI * (x + 0.044715 * x * x * x)))


def _layernorm(x, eps=1e-5):
    # LayerNorm(..., elementwise_affine=False), eps matches PyTorch default.
    mu = jnp.mean(x, axis=-1, keepdims=True)
    xc = x - mu
    var = jnp.mean(xc * xc, axis=-1, keepdims=True)
    return xc * jax.lax.rsqrt(var + eps)


# ---------------------------------------------------------------------------
# Pallas kernel (one batch tile per grid step)
# ---------------------------------------------------------------------------
def sparsenn_item_kernel(base_ref, title_ref, wd_ref, bd_ref,
                         w1b_ref, w1d_ref, b1_ref,
                         w2_ref, b2_ref, w3_ref, b3_ref, out_ref):
    f32 = jnp.float32
    bf16 = jnp.bfloat16

    # dense_embeddings = GELU(title @ Wd + bd)   (bf16 MXU inputs, f32 acc)
    dense = jnp.dot(title_ref[...], wd_ref[...],
                    preferred_element_type=f32) + bd_ref[...]
    dense = _gelu_tanh(dense)

    # combined_rep @ W1 as two aligned partial matmuls:
    #   base = [id | date | genre(folded, padded)]  (TB, 192)   K=192 push
    #   dense                                       (TB,  64)   K=64 push
    h = (jnp.dot(base_ref[...], w1b_ref[...], preferred_element_type=f32)
         + jnp.dot(dense.astype(bf16), w1d_ref[...], preferred_element_type=f32)
         + b1_ref[...])

    h = _gelu_tanh(_layernorm(h))                                   # LN(128)+GELU
    h = jnp.dot(h.astype(bf16), w2_ref[...],
                preferred_element_type=f32) + b2_ref[...]
    h = _gelu_tanh(_layernorm(h))                                   # LN(64)+GELU
    h = jnp.dot(h.astype(bf16), w3_ref[...],
                preferred_element_type=f32) + b3_ref[...]

    out_ref[...] = _gelu_tanh(h)                                    # final act


# ---------------------------------------------------------------------------
# Wrapper: gathers + algebraic prep (XLA glue) + gridded pallas_call
# ---------------------------------------------------------------------------
def movielens_item_forward(movie_ids, movie_dates, movie_genres,
                           movie_title_emb, id_table, date_table,
                           genre_matrix, params, *, block_rows=512):
    """block_rows: batch tile.  ~3.3 KB/row incl. double buffering, so 512
    fits every generation's default scoped VMEM; raise to 2048-4096 on
    v6e/v7x for long batches (stay <= ~4K on v7x's 64 MiB VMEM)."""
    f32, bf16 = jnp.float32, jnp.bfloat16
    B = movie_ids.shape[0]
    D = id_table.shape[1]                       # feat_embed_dim
    num_genres = genre_matrix.shape[0]
    dense_in = movie_title_emb.shape[1]
    out_dim = params["w3"].shape[1]
    h1 = params["w1"].shape[1]                  # 128

    # --- embedding gathers (XLA glue) --------------------------------------
    id_emb = id_table[movie_ids]                # (B, D)
    date_emb = date_table[movie_dates]          # (B, D)

    # --- fold genre matrix into W1; pad genres to D lanes (exact) ----------
    w1 = params["w1"]                           # (4D, 128), rows: id|date|genre|dense
    w1g = genre_matrix @ w1[2 * D:3 * D, :]     # (num_genres, 128)
    w1g_pad = jnp.zeros((D, h1), f32).at[:num_genres, :].set(w1g)
    genres_pad = jnp.zeros((B, D), f32).at[:, :num_genres].set(movie_genres)

    # Stacked W1 pieces matching base = [id | date | genre_pad] and dense.
    w1_base = jnp.concatenate([w1[0:D, :], w1[D:2 * D, :], w1g_pad], axis=0)  # (3D, 128)
    w1_dense = w1[3 * D:4 * D, :]                                             # (D, 128)

    # --- pad dense input 324 -> 384 (3x128 lanes); extra Wd rows are zero ---
    dense_in_pad = _round_up(dense_in, 128)
    title_pad = jnp.zeros((B, dense_in_pad), f32).at[:, :dense_in].set(movie_title_emb)
    wd_pad = jnp.zeros((dense_in_pad, D), f32).at[:dense_in, :].set(params["wd"])

    # --- bf16 for all matmul operands (halves HBM traffic, MXU-native) -----
    base = jnp.concatenate([id_emb, date_emb, genres_pad], axis=1).astype(bf16)  # (B, 3D)
    title_pad = title_pad.astype(bf16)
    wd_b = wd_pad.astype(bf16)
    w1b_b = w1_base.astype(bf16)
    w1d_b = w1_dense.astype(bf16)
    w2_b = params["w2"].astype(bf16)
    w3_b = params["w3"].astype(bf16)
    bd, b1, b2, b3 = (params["bd"].astype(f32), params["b1"].astype(f32),
                      params["b2"].astype(f32), params["b3"].astype(f32))

    # --- batch tiling -------------------------------------------------------
    Bp = _round_up(B, 16)                       # bf16 sublane packing
    tb = min(block_rows, Bp)
    Bp = _round_up(Bp, tb)
    if Bp != B:
        base = jnp.pad(base, ((0, Bp - B), (0, 0)))
        title_pad = jnp.pad(title_pad, ((0, Bp - B), (0, 0)))
    grid = (Bp // tb,)

    def batch_spec(cols):
        return pl.BlockSpec((tb, cols), lambda i: (i, 0))

    def resident_spec(arr):
        return pl.BlockSpec(arr.shape, lambda i: (0, 0))

    out = pl.pallas_call(
        sparsenn_item_kernel,
        out_shape=jax.ShapeDtypeStruct((Bp, out_dim), f32),
        grid=grid,
        in_specs=[
            batch_spec(3 * D),            # base: [id | date | genre_pad]
            batch_spec(dense_in_pad),     # padded title embeddings
            resident_spec(wd_b), resident_spec(bd),
            resident_spec(w1b_b), resident_spec(w1d_b), resident_spec(b1),
            resident_spec(w2_b), resident_spec(b2),
            resident_spec(w3_b), resident_spec(b3),
        ],
        out_specs=batch_spec(out_dim),
        compiler_params=pltpu.CompilerParams(
            dimension_semantics=("parallel",)),
    )(base, title_pad, wd_b, bd, w1b_b, w1d_b, b1, w2_b, b2, w3_b, b3)

    return out[:B]


# ---------------------------------------------------------------------------
# Pure-JAX reference (f32, exact-erf GELU — PyTorch module semantics)
# ---------------------------------------------------------------------------
def reference_forward(movie_ids, movie_dates, movie_genres, movie_title_emb,
                      id_table, date_table, genre_matrix, params):
    id_emb = id_table[movie_ids]
    date_emb = date_table[movie_dates]
    genre_emb = movie_genres @ genre_matrix
    dense = _gelu_exact(movie_title_emb @ params["wd"] + params["bd"])
    combined = jnp.concatenate([id_emb, date_emb, genre_emb, dense], axis=1)
    h = _gelu_exact(_layernorm(combined @ params["w1"] + params["b1"]))
    h = _gelu_exact(_layernorm(h @ params["w2"] + params["b2"]))
    h = h @ params["w3"] + params["b3"]
    return _gelu_exact(h)


# ---------------------------------------------------------------------------
# Deterministic parameter construction
# ---------------------------------------------------------------------------
def make_params(key, num_ids, num_dates, num_genres,
                feat_dim=64, dense_in=324, out_dim=128):
    ks = jax.random.split(key, 12)

    def linear(kw, kb, fan_in, fan_out):
        bound = 1.0 / math.sqrt(fan_in)
        w = jax.random.uniform(kw, (fan_in, fan_out), jnp.float32, -bound, bound)
        b = jax.random.uniform(kb, (1, fan_out), jnp.float32, -bound, bound)
        return w, b

    id_table = jax.random.normal(ks[0], (num_ids, feat_dim), jnp.float32)
    date_table = jax.random.normal(ks[1], (num_dates, feat_dim), jnp.float32)
    xav_std = math.sqrt(2.0 / (num_genres + feat_dim))   # xavier_normal_
    genre_matrix = xav_std * jax.random.normal(ks[2], (num_genres, feat_dim),
                                               jnp.float32)
    wd, bd = linear(ks[3], ks[4], dense_in, feat_dim)
    w1, b1 = linear(ks[5], ks[6], 4 * feat_dim, 128)
    w2, b2 = linear(ks[7], ks[8], 128, 64)
    w3, b3 = linear(ks[9], ks[10], 64, out_dim)

    params = dict(wd=wd, bd=bd, w1=w1, b1=b1, w2=w2, b2=b2, w3=w3, b3=b3)
    return id_table, date_table, genre_matrix, params


if __name__ == "__main__":
    key = jax.random.PRNGKey(0)
    B = 8
    NUM_IDS, NUM_DATES, NUM_GENRES = 100, 50, 24
    FEAT_DIM, DENSE_IN, OUT_DIM = 64, 324, 128

    kp, ki, kd, kg, kt = jax.random.split(key, 5)
    id_table, date_table, genre_matrix, params = make_params(
        kp, NUM_IDS, NUM_DATES, NUM_GENRES, FEAT_DIM, DENSE_IN, OUT_DIM)

    movie_ids = jax.random.randint(ki, (B,), 0, NUM_IDS, dtype=jnp.int32)
    movie_dates = jax.random.randint(kd, (B,), 0, NUM_DATES, dtype=jnp.int32)
    movie_genres = jax.random.uniform(kg, (B, NUM_GENRES), jnp.float32)
    movie_title_emb = jax.random.normal(kt, (B, DENSE_IN), jnp.float32)

    out = movielens_item_forward(movie_ids, movie_dates, movie_genres,
                                 movie_title_emb, id_table, date_table,
                                 genre_matrix, params)
    out = jax.block_until_ready(out)

    ref = reference_forward(movie_ids, movie_dates, movie_genres,
                            movie_title_emb, id_table, date_table,
                            genre_matrix, params)
    assert out.shape == (B, OUT_DIM)
    # bf16 MXU operands + tanh-GELU in the kernel vs f32/erf reference:
    # relaxed tolerance (still catches any structural/indexing bug).
    assert jnp.allclose(out, ref, rtol=5e-2, atol=5e-2), "mismatch vs reference"

    print("KERNEL_OK")
</pallas_src>

<mosaic_0001>
module attributes {stable_mosaic.version = 11 : i64} {
  func.func @sparsenn_item_kernel(%arg0: i32, %arg1: memref<16x192xbf16, #tpu.memory_space<vmem>>, %arg2: memref<16x384xbf16, #tpu.memory_space<vmem>>, %arg3: memref<384x64xbf16, #tpu.memory_space<vmem>>, %arg4: memref<1x64xf32, #tpu.memory_space<vmem>>, %arg5: memref<192x128xbf16, #tpu.memory_space<vmem>>, %arg6: memref<64x128xbf16, #tpu.memory_space<vmem>>, %arg7: memref<1x128xf32, #tpu.memory_space<vmem>>, %arg8: memref<128x64xbf16, #tpu.memory_space<vmem>>, %arg9: memref<1x64xf32, #tpu.memory_space<vmem>>, %arg10: memref<64x128xbf16, #tpu.memory_space<vmem>>, %arg11: memref<1x128xf32, #tpu.memory_space<vmem>>, %arg12: memref<16x128xf32, #tpu.memory_space<vmem>>) attributes {dimension_semantics = [#tpu.dimension_semantics<parallel>], iteration_bounds = array<i64: 1>, scalar_prefetch = 0 : i64, scratch_operands = 0 : i64, tpu.core_type = #tpu.core_type<tc>, window_params = [{transform_indices = @transform_0, window_bounds = array<i64: 16, 192>}, {transform_indices = @transform_1, window_bounds = array<i64: 16, 384>}, {pipeline_mode = #tpu.pipeline_mode<synchronous>, transform_indices = @transform_2, window_bounds = array<i64: 384, 64>}, {pipeline_mode = #tpu.pipeline_mode<synchronous>, transform_indices = @transform_3, window_bounds = array<i64: 1, 64>}, {pipeline_mode = #tpu.pipeline_mode<synchronous>, transform_indices = @transform_4, window_bounds = array<i64: 192, 128>}, {pipeline_mode = #tpu.pipeline_mode<synchronous>, transform_indices = @transform_5, window_bounds = array<i64: 64, 128>}, {pipeline_mode = #tpu.pipeline_mode<synchronous>, transform_indices = @transform_6, window_bounds = array<i64: 1, 128>}, {pipeline_mode = #tpu.pipeline_mode<synchronous>, transform_indices = @transform_7, window_bounds = array<i64: 128, 64>}, {pipeline_mode = #tpu.pipeline_mode<synchronous>, transform_indices = @transform_8, window_bounds = array<i64: 1, 64>}, {pipeline_mode = #tpu.pipeline_mode<synchronous>, transform_indices = @transform_9, window_bounds = array<i64: 64, 128>}, {pipeline_mode = #tpu.pipeline_mode<synchronous>, transform_indices = @transform_10, window_bounds = array<i64: 1, 128>}, {transform_indices = @transform_11, window_bounds = array<i64: 16, 128>}]} {
    %c0 = arith.constant 0 : index
    %c0_0 = arith.constant 0 : index
    %0 = vector.load %arg2[%c0, %c0_0] : memref<16x384xbf16, #tpu.memory_space<vmem>>, vector<16x384xbf16>
    %c0_1 = arith.constant 0 : index
    %c0_2 = arith.constant 0 : index
    %1 = vector.load %arg3[%c0_1, %c0_2] : memref<384x64xbf16, #tpu.memory_space<vmem>>, vector<384x64xbf16>
    %cst = arith.constant dense<0.000000e+00> : vector<16x64xf32>
    %2 = tpu.matmul %0, %1, %cst {dimension_numbers = #tpu.dot_dimension_numbers<[1], [0], [0], [1], [0, 0, 1, 1], [], []>} : vector<16x384xbf16>, vector<384x64xbf16>, vector<16x64xf32> -> vector<16x64xf32>
    %c0_3 = arith.constant 0 : index
    %c0_4 = arith.constant 0 : index
    %3 = vector.load %arg4[%c0_3, %c0_4] : memref<1x64xf32, #tpu.memory_space<vmem>>, vector<1x64xf32>
    %4 = vector.broadcast %3 : vector<1x64xf32> to vector<16x64xf32>
    %5 = arith.addf %2, %4 : vector<16x64xf32>
    %cst_5 = arith.constant 5.000000e-01 : f32
    %6 = vector.broadcast %cst_5 : f32 to vector<16x64xf32>
    %7 = arith.mulf %6, %5 : vector<16x64xf32>
    %cst_6 = arith.constant 4.471500e-02 : f32
    %8 = vector.broadcast %cst_6 : f32 to vector<16x64xf32>
    %9 = arith.mulf %8, %5 : vector<16x64xf32>
    %10 = arith.mulf %9, %5 : vector<16x64xf32>
    %11 = arith.mulf %10, %5 : vector<16x64xf32>
    %12 = arith.addf %5, %11 : vector<16x64xf32>
    %cst_7 = arith.constant 0.797884583 : f32
    %13 = vector.broadcast %cst_7 : f32 to vector<16x64xf32>
    %14 = arith.mulf %13, %12 : vector<16x64xf32>
    %15 = math.tanh %14 : vector<16x64xf32>
    %cst_8 = arith.constant 1.000000e+00 : f32
    %16 = vector.broadcast %cst_8 : f32 to vector<16x64xf32>
    %17 = arith.addf %16, %15 : vector<16x64xf32>
    %18 = arith.mulf %7, %17 : vector<16x64xf32>
    %c0_9 = arith.constant 0 : index
    %c0_10 = arith.constant 0 : index
    %19 = vector.load %arg1[%c0_9, %c0_10] : memref<16x192xbf16, #tpu.memory_space<vmem>>, vector<16x192xbf16>
    %c0_11 = arith.constant 0 : index
    %c0_12 = arith.constant 0 : index
    %20 = vector.load %arg5[%c0_11, %c0_12] : memref<192x128xbf16, #tpu.memory_space<vmem>>, vector<192x128xbf16>
    %cst_13 = arith.constant dense<0.000000e+00> : vector<16x128xf32>
    %21 = tpu.matmul %19, %20, %cst_13 {dimension_numbers = #tpu.dot_dimension_numbers<[1], [0], [0], [1], [0, 0, 1, 1], [], []>} : vector<16x192xbf16>, vector<192x128xbf16>, vector<16x128xf32> -> vector<16x128xf32>
    %22 = arith.truncf %18 : vector<16x64xf32> to vector<16x64xbf16>
    %c0_14 = arith.constant 0 : index
    %c0_15 = arith.constant 0 : index
    %23 = vector.load %arg6[%c0_14, %c0_15] : memref<64x128xbf16, #tpu.memory_space<vmem>>, vector<64x128xbf16>
    %cst_16 = arith.constant dense<0.000000e+00> : vector<16x128xf32>
    %24 = tpu.matmul %22, %23, %cst_16 {dimension_numbers = #tpu.dot_dimension_numbers<[1], [0], [0], [1], [0, 0, 1, 1], [], []>} : vector<16x64xbf16>, vector<64x128xbf16>, vector<16x128xf32> -> vector<16x128xf32>
    %25 = arith.addf %21, %24 : vector<16x128xf32>
    %c0_17 = arith.constant 0 : index
    %c0_18 = arith.constant 0 : index
    %26 = vector.load %arg7[%c0_17, %c0_18] : memref<1x128xf32, #tpu.memory_space<vmem>>, vector<1x128xf32>
    %27 = vector.broadcast %26 : vector<1x128xf32> to vector<16x128xf32>
    %28 = arith.addf %25, %27 : vector<16x128xf32>
    %cst_19 = arith.constant dense<0.000000e+00> : vector<16xf32>
    %29 = vector.multi_reduction <add>, %28, %cst_19 [1] : vector<16x128xf32> to vector<16xf32>
    %30 = vector.shape_cast %29 : vector<16xf32> to vector<16x1xf32>
    %cst_20 = arith.constant 1.280000e+02 : f32
    %31 = vector.broadcast %cst_20 : f32 to vector<16x1xf32>
    %32 = arith.divf %30, %31 : vector<16x1xf32>
    %33 = vector.broadcast %32 : vector<16x1xf32> to vector<16x128xf32>
    %34 = arith.subf %28, %33 : vector<16x128xf32>
    %35 = arith.mulf %34, %34 : vector<16x128xf32>
    %cst_21 = arith.constant dense<0.000000e+00> : vector<16xf32>
    %36 = vector.multi_reduction <add>, %35, %cst_21 [1] : vector<16x128xf32> to vector<16xf32>
    %37 = vector.shape_cast %36 : vector<16xf32> to vector<16x1xf32>
    %cst_22 = arith.constant 1.280000e+02 : f32
    %38 = vector.broadcast %cst_22 : f32 to vector<16x1xf32>
    %39 = arith.divf %37, %38 : vector<16x1xf32>
    %cst_23 = arith.constant 9.99999974E-6 : f32
    %40 = vector.broadcast %cst_23 : f32 to vector<16x1xf32>
    %41 = arith.addf %39, %40 : vector<16x1xf32>
    %42 = math.rsqrt %41 : vector<16x1xf32>
    %43 = vector.broadcast %42 : vector<16x1xf32> to vector<16x128xf32>
    %44 = arith.mulf %34, %43 : vector<16x128xf32>
    %cst_24 = arith.constant 5.000000e-01 : f32
    %45 = vector.broadcast %cst_24 : f32 to vector<16x128xf32>
    %46 = arith.mulf %45, %44 : vector<16x128xf32>
    %cst_25 = arith.constant 4.471500e-02 : f32
    %47 = vector.broadcast %cst_25 : f32 to vector<16x128xf32>
    %48 = arith.mulf %47, %44 : vector<16x128xf32>
    %49 = arith.mulf %48, %44 : vector<16x128xf32>
    %50 = arith.mulf %49, %44 : vector<16x128xf32>
    %51 = arith.addf %44, %50 : vector<16x128xf32>
    %cst_26 = arith.constant 0.797884583 : f32
    %52 = vector.broadcast %cst_26 : f32 to vector<16x128xf32>
    %53 = arith.mulf %52, %51 : vector<16x128xf32>
    %54 = math.tanh %53 : vector<16x128xf32>
    %cst_27 = arith.constant 1.000000e+00 : f32
    %55 = vector.broadcast %cst_27 : f32 to vector<16x128xf32>
    %56 = arith.addf %55, %54 : vector<16x128xf32>
    %57 = arith.mulf %46, %56 : vector<16x128xf32>
    %58 = arith.truncf %57 : vector<16x128xf32> to vector<16x128xbf16>
    %c0_28 = arith.constant 0 : index
    %c0_29 = arith.constant 0 : index
    %59 = vector.load %arg8[%c0_28, %c0_29] : memref<128x64xbf16, #tpu.memory_space<vmem>>, vector<128x64xbf16>
    %cst_30 = arith.constant dense<0.000000e+00> : vector<16x64xf32>
    %60 = tpu.matmul %58, %59, %cst_30 {dimension_numbers = #tpu.dot_dimension_numbers<[1], [0], [0], [1], [0, 0, 1, 1], [], []>} : vector<16x128xbf16>, vector<128x64xbf16>, vector<16x64xf32> -> vector<16x64xf32>
    %c0_31 = arith.constant 0 : index
    %c0_32 = arith.constant 0 : index
    %61 = vector.load %arg9[%c0_31, %c0_32] : memref<1x64xf32, #tpu.memory_space<vmem>>, vector<1x64xf32>
    %62 = vector.broadcast %61 : vector<1x64xf32> to vector<16x64xf32>
    %63 = arith.addf %60, %62 : vector<16x64xf32>
    %cst_33 = arith.constant dense<0.000000e+00> : vector<16xf32>
    %64 = vector.multi_reduction <add>, %63, %cst_33 [1] : vector<16x64xf32> to vector<16xf32>
    %65 = vector.shape_cast %64 : vector<16xf32> to vector<16x1xf32>
    %cst_34 = arith.constant 6.400000e+01 : f32
    %66 = vector.broadcast %cst_34 : f32 to vector<16x1xf32>
    %67 = arith.divf %65, %66 : vector<16x1xf32>
    %68 = vector.broadcast %67 : vector<16x1xf32> to vector<16x64xf32>
    %69 = arith.subf %63, %68 : vector<16x64xf32>
    %70 = arith.mulf %69, %69 : vector<16x64xf32>
    %cst_35 = arith.constant dense<0.000000e+00> : vector<16xf32>
    %71 = vector.multi_reduction <add>, %70, %cst_35 [1] : vector<16x64xf32> to vector<16xf32>
    %72 = vector.shape_cast %71 : vector<16xf32> to vector<16x1xf32>
    %cst_36 = arith.constant 6.400000e+01 : f32
    %73 = vector.broadcast %cst_36 : f32 to vector<16x1xf32>
    %74 = arith.divf %72, %73 : vector<16x1xf32>
    %cst_37 = arith.constant 9.99999974E-6 : f32
    %75 = vector.broadcast %cst_37 : f32 to vector<16x1xf32>
    %76 = arith.addf %74, %75 : vector<16x1xf32>
    %77 = math.rsqrt %76 : vector<16x1xf32>
    %78 = vector.broadcast %77 : vector<16x1xf32> to vector<16x64xf32>
    %79 = arith.mulf %69, %78 : vector<16x64xf32>
    %cst_38 = arith.constant 5.000000e-01 : f32
    %80 = vector.broadcast %cst_38 : f32 to vector<16x64xf32>
    %81 = arith.mulf %80, %79 : vector<16x64xf32>
    %cst_39 = arith.constant 4.471500e-02 : f32
    %82 = vector.broadcast %cst_39 : f32 to vector<16x64xf32>
    %83 = arith.mulf %82, %79 : vector<16x64xf32>
    %84 = arith.mulf %83, %79 : vector<16x64xf32>
    %85 = arith.mulf %84, %79 : vector<16x64xf32>
    %86 = arith.addf %79, %85 : vector<16x64xf32>
    %cst_40 = arith.constant 0.797884583 : f32
    %87 = vector.broadcast %cst_40 : f32 to vector<16x64xf32>
    %88 = arith.mulf %87, %86 : vector<16x64xf32>
    %89 = math.tanh %88 : vector<16x64xf32>
    %cst_41 = arith.constant 1.000000e+00 : f32
    %90 = vector.broadcast %cst_41 : f32 to vector<16x64xf32>
    %91 = arith.addf %90, %89 : vector<16x64xf32>
    %92 = arith.mulf %81, %91 : vector<16x64xf32>
    %93 = arith.truncf %92 : vector<16x64xf32> to vector<16x64xbf16>
    %c0_42 = arith.constant 0 : index
    %c0_43 = arith.constant 0 : index
    %94 = vector.load %arg10[%c0_42, %c0_43] : memref<64x128xbf16, #tpu.memory_space<vmem>>, vector<64x128xbf16>
    %cst_44 = arith.constant dense<0.000000e+00> : vector<16x128xf32>
    %95 = tpu.matmul %93, %94, %cst_44 {dimension_numbers = #tpu.dot_dimension_numbers<[1], [0], [0], [1], [0, 0, 1, 1], [], []>} : vector<16x64xbf16>, vector<64x128xbf16>, vector<16x128xf32> -> vector<16x128xf32>
    %c0_45 = arith.constant 0 : index
    %c0_46 = arith.constant 0 : index
    %96 = vector.load %arg11[%c0_45, %c0_46] : memref<1x128xf32, #tpu.memory_space<vmem>>, vector<1x128xf32>
    %97 = vector.broadcast %96 : vector<1x128xf32> to vector<16x128xf32>
    %98 = arith.addf %95, %97 : vector<16x128xf32>
    %cst_47 = arith.constant 5.000000e-01 : f32
    %99 = vector.broadcast %cst_47 : f32 to vector<16x128xf32>
    %100 = arith.mulf %99, %98 : vector<16x128xf32>
    %cst_48 = arith.constant 4.471500e-02 : f32
    %101 = vector.broadcast %cst_48 : f32 to vector<16x128xf32>
    %102 = arith.mulf %101, %98 : vector<16x128xf32>
    %103 = arith.mulf %102, %98 : vector<16x128xf32>
    %104 = arith.mulf %103, %98 : vector<16x128xf32>
    %105 = arith.addf %98, %104 : vector<16x128xf32>
    %cst_49 = arith.constant 0.797884583 : f32
    %106 = vector.broadcast %cst_49 : f32 to vector<16x128xf32>
    %107 = arith.mulf %106, %105 : vector<16x128xf32>
    %108 = math.tanh %107 : vector<16x128xf32>
    %cst_50 = arith.constant 1.000000e+00 : f32
    %109 = vector.broadcast %cst_50 : f32 to vector<16x128xf32>
    %110 = arith.addf %109, %108 : vector<16x128xf32>
    %111 = arith.mulf %100, %110 : vector<16x128xf32>
    %c0_51 = arith.constant 0 : index
    %c0_52 = arith.constant 0 : index
    %112 = vector.load %arg12[%c0_51, %c0_52] : memref<16x128xf32, #tpu.memory_space<vmem>>, vector<16x128xf32>
    tpu.vector_store %arg12[%c0_51, %c0_52], %111 {strides = array<i32>} : memref<16x128xf32, #tpu.memory_space<vmem>>, vector<16x128xf32>,
    return
  }
  func.func @transform_0(%arg0: i32) -> (i32, i32) {
    %c0_i32 = arith.constant 0 : i32
    %c0_i32_0 = arith.constant 0 : i32
    return %arg0, %c0_i32 : i32, i32
  }
  func.func @transform_1(%arg0: i32) -> (i32, i32) {
    %c0_i32 = arith.constant 0 : i32
    %c0_i32_0 = arith.constant 0 : i32
    return %arg0, %c0_i32 : i32, i32
  }
  func.func @transform_2(%arg0: i32) -> (i32, i32) {
    %c0_i32 = arith.constant 0 : i32
    %c0_i32_0 = arith.constant 0 : i32
    %c0_i32_1 = arith.constant 0 : i32
    return %c0_i32, %c0_i32_0 : i32, i32
  }
  func.func @transform_3(%arg0: i32) -> (i32, i32) {
    %c0_i32 = arith.constant 0 : i32
    %c0_i32_0 = arith.constant 0 : i32
    %c0_i32_1 = arith.constant 0 : i32
    return %c0_i32, %c0_i32_0 : i32, i32
  }
  func.func @transform_4(%arg0: i32) -> (i32, i32) {
    %c0_i32 = arith.constant 0 : i32
    %c0_i32_0 = arith.constant 0 : i32
    %c0_i32_1 = arith.constant 0 : i32
    return %c0_i32, %c0_i32_0 : i32, i32
  }
  func.func @transform_5(%arg0: i32) -> (i32, i32) {
    %c0_i32 = arith.constant 0 : i32
    %c0_i32_0 = arith.constant 0 : i32
    %c0_i32_1 = arith.constant 0 : i32
    return %c0_i32, %c0_i32_0 : i32, i32
  }
  func.func @transform_6(%arg0: i32) -> (i32, i32) {
    %c0_i32 = arith.constant 0 : i32
    %c0_i32_0 = arith.constant 0 : i32
    %c0_i32_1 = arith.constant 0 : i32
    return %c0_i32, %c0_i32_0 : i32, i32
  }
  func.func @transform_7(%arg0: i32) -> (i32, i32) {
    %c0_i32 = arith.constant 0 : i32
    %c0_i32_0 = arith.constant 0 : i32
    %c0_i32_1 = arith.constant 0 : i32
    return %c0_i32, %c0_i32_0 : i32, i32
  }
  func.func @transform_8(%arg0: i32) -> (i32, i32) {
    %c0_i32 = arith.constant 0 : i32
    %c0_i32_0 = arith.constant 0 : i32
    %c0_i32_1 = arith.constant 0 : i32
    return %c0_i32, %c0_i32_0 : i32, i32
  }
  func.func @transform_9(%arg0: i32) -> (i32, i32) {
    %c0_i32 = arith.constant 0 : i32
    %c0_i32_0 = arith.constant 0 : i32
    %c0_i32_1 = arith.constant 0 : i32
    return %c0_i32, %c0_i32_0 : i32, i32
  }
  func.func @transform_10(%arg0: i32) -> (i32, i32) {
    %c0_i32 = arith.constant 0 : i32
    %c0_i32_0 = arith.constant 0 : i32
    %c0_i32_1 = arith.constant 0 : i32
    return %c0_i32, %c0_i32_0 : i32, i32
  }
  func.func @transform_11(%arg0: i32) -> (i32, i32) {
    %c0_i32 = arith.constant 0 : i32
    %c0_i32_0 = arith.constant 0 : i32
    return %arg0, %c0_i32 : i32, i32
  }
}

</mosaic_0001>

<llo_original>
// kernel: tpu_custom_call.1
$region0: #{tpu_custom_call.1}
  #allocation0 [shape = 'u32[]', space=smem, size = 0x4, offset = 0x4, fixed_abs, tag = 'smem constant byte address 0x4 - core index']
  #allocation1 [shape = 'u32[72,128]{1,0:T(1,128)}', space=vmem, size = 0x9000, scoped, tag = 'internal scratch']
  %s0 = inlined_call_operand.vmem [shape: bf16[16,192], index: 0, kind: input, shape index: {}]
  %s1 = inlined_call_operand.vmem [shape: bf16[16,384], index: 1, kind: input, shape index: {}]
  %s2 = inlined_call_operand.vmem [shape: bf16[384,64], index: 2, kind: input, shape index: {}]
  %s3 = inlined_call_operand.vmem [shape: f32[1,64], index: 3, kind: input, shape index: {}]
  %s4 = inlined_call_operand.vmem [shape: bf16[192,128], index: 4, kind: input, shape index: {}]
  %s5 = inlined_call_operand.vmem [shape: bf16[64,128], index: 5, kind: input, shape index: {}]
  %s6 = inlined_call_operand.vmem [shape: f32[1,128], index: 6, kind: input, shape index: {}]
  %s7 = inlined_call_operand.vmem [shape: bf16[128,64], index: 7, kind: input, shape index: {}]
  %s8 = inlined_call_operand.vmem [shape: f32[1,64], index: 8, kind: input, shape index: {}]
  %s9 = inlined_call_operand.vmem [shape: bf16[64,128], index: 9, kind: input, shape index: {}]
  %s10 = inlined_call_operand.vmem [shape: f32[1,128], index: 10, kind: input, shape index: {}]
  %s11 = inlined_call_operand.hbm [shape: f32[16,128], index: 11, kind: output, shape index: {}]
  %s12 = sld [smem:[#allocation0]]
  $region54: #{tpu_custom_call.1} parent=0
    _
  %s14 = ssub.s32 1, %s12
  %s15 = scalar_select 0, %s14, %s12
  $region1: #{tpu_custom_call.1} parent=0
    #allocation2 [shape = 'u8[8192]{0}', space=vmem, size = 0x2000, scoped, tag = 'output window, operand 0, single buffered']
    #allocation3 [shape = 's32[1]{0}', space=sflag, size = 0x4, scoped, tag = 'scoped memory for tpu_custom_call.1']
    %16 = vsyncpa [#allocation3], 0
    // Predicated region
    $region2: #{tpu_custom_call.1} parent=1 // pred_check
      _
    $region3: #{tpu_custom_call.1} parent=1 // pred_check_branch
      %18 = sbr.rel (0) target = $region5
    $region4: #{tpu_custom_call.1} parent=1 // pred_region
      _
    $region5: #{tpu_custom_call.1} parent=1 // pred_fallthru
      _
    // Predicated region
    $region6: #{tpu_custom_call.1} parent=1 // pred_check
      _
    $region7: #{tpu_custom_call.1} parent=1 // pred_check_branch
      %20 = sbr.rel (0) target = $region9
    $region8: #{tpu_custom_call.1} parent=1 // pred_region
      _
    $region9: #{tpu_custom_call.1} parent=1 // pred_fallthru
      _
    // Predicated region
    $region10: #{tpu_custom_call.1} parent=1 // pred_check
      _
    $region11: #{tpu_custom_call.1} parent=1 // pred_check_branch
      %22 = sbr.rel (0) target = $region13
    $region12: #{tpu_custom_call.1} parent=1 // pred_region
      _
    $region13: #{tpu_custom_call.1} parent=1 // pred_fallthru
      _
    // Predicated region
    $region14: #{tpu_custom_call.1} parent=1 // pred_check
      _
    $region15: #{tpu_custom_call.1} parent=1 // pred_check_branch
      %24 = sbr.rel (0) target = $region17
    $region16: #{tpu_custom_call.1} parent=1 // pred_region
      _
    $region17: #{tpu_custom_call.1} parent=1 // pred_fallthru
      _
    // Predicated region
    $region18: #{tpu_custom_call.1} parent=1 // pred_check
      _
    $region19: #{tpu_custom_call.1} parent=1 // pred_check_branch
      %26 = sbr.rel (0) target = $region21
    $region20: #{tpu_custom_call.1} parent=1 // pred_region
      _
    $region21: #{tpu_custom_call.1} parent=1 // pred_fallthru
      _
    // Predicated region
    $region22: #{tpu_custom_call.1} parent=1 // pred_check
      _
    $region23: #{tpu_custom_call.1} parent=1 // pred_check_branch
      %28 = sbr.rel (0) target = $region25
    $region24: #{tpu_custom_call.1} parent=1 // pred_region
      _
    $region25: #{tpu_custom_call.1} parent=1 // pred_fallthru
      _
    // Predicated region
    $region26: #{tpu_custom_call.1} parent=1 // pred_check
      _
    $region27: #{tpu_custom_call.1} parent=1 // pred_check_branch
      %30 = sbr.rel (0) target = $region29
    $region28: #{tpu_custom_call.1} parent=1 // pred_region
      _
    $region29: #{tpu_custom_call.1} parent=1 // pred_fallthru
      _
    // Predicated region
    $region30: #{tpu_custom_call.1} parent=1 // pred_check
      _
    $region31: #{tpu_custom_call.1} parent=1 // pred_check_branch
      %32 = sbr.rel (0) target = $region33
    $region32: #{tpu_custom_call.1} parent=1 // pred_region
      _
    $region33: #{tpu_custom_call.1} parent=1 // pred_fallthru
      _
    // Predicated region
    $region34: #{tpu_custom_call.1} parent=1 // pred_check
      _
    $region35: #{tpu_custom_call.1} parent=1 // pred_check_branch
      %34 = sbr.rel (0) target = $region37
    $region36: #{tpu_custom_call.1} parent=1 // pred_region
      _
    $region37: #{tpu_custom_call.1} parent=1 // pred_fallthru
      _
    // Predicated region
    $region38: #{tpu_custom_call.1} parent=1 // pred_check
      _
    $region39: #{tpu_custom_call.1} parent=1 // pred_check_branch
      %36 = sbr.rel (0) target = $region41
    $region40: #{tpu_custom_call.1} parent=1 // pred_region
      _
    $region41: #{tpu_custom_call.1} parent=1 // pred_fallthru
      _
    // Predicated region
    $region42: #{tpu_custom_call.1} parent=1 // pred_check
      _
    $region43: #{tpu_custom_call.1} parent=1 // pred_check_branch
      %38 = sbr.rel (0) target = $region45
    $region44: #{tpu_custom_call.1} parent=1 // pred_region
      _
    $region45: #{tpu_custom_call.1} parent=1 // pred_fallthru
      _
    %v40 = vld [vmem:[%s1] sm:$0xff]
    %v41 = vld [vmem:[%s1 + $0x8] sm:$0xf]
    %v42 = vld [vmem:[%s1 + $0xc] sm:$0xff]
    %v43 = vld [vmem:[%s1 + $0x14] sm:$0xf]
    %v44 = vld [vmem:[%s2] sm:$0xf]
    %v45 = vld [vmem:[%s2 + $0x4] sm:$0xf]
    %v46 = vld [vmem:[%s2 + $0x8] sm:$0xf]
    %v47 = vld [vmem:[%s2 + $0xc] sm:$0xf]
    %v48 = vld [vmem:[%s2 + $0x10] sm:$0xf]
    %v49 = vld [vmem:[%s2 + $0x14] sm:$0xf]
    %v50 = vld [vmem:[%s2 + $0x18] sm:$0xf]
    %v51 = vld [vmem:[%s2 + $0x1c] sm:$0xf]
    %v52 = vld [vmem:[%s2 + $0x20] sm:$0xf]
    %v53 = vld [vmem:[%s2 + $0x24] sm:$0xf]
    %v54 = vld [vmem:[%s2 + $0x28] sm:$0xf]
    %v55 = vld [vmem:[%s2 + $0x2c] sm:$0xf]
    %v56 = vld [vmem:[%s2 + $0x30] sm:$0xf]
    %v57 = vld [vmem:[%s2 + $0x34] sm:$0xf]
    %v58 = vld [vmem:[%s2 + $0x38] sm:$0xf]
    %v59 = vld [vmem:[%s2 + $0x3c] sm:$0xf]
    %v60 = vld [vmem:[%s2 + $0x40] sm:$0xf]
    %v61 = vld [vmem:[%s2 + $0x44] sm:$0xf]
    %v62 = vld [vmem:[%s2 + $0x48] sm:$0xf]
    %v63 = vld [vmem:[%s2 + $0x4c] sm:$0xf]
    %v64 = vld [vmem:[%s2 + $0x50] sm:$0xf]
    %v65 = vld [vmem:[%s2 + $0x54] sm:$0xf]
    %v66 = vld [vmem:[%s2 + $0x58] sm:$0xf]
    %v67 = vld [vmem:[%s2 + $0x5c] sm:$0xf]
    %v68 = vld [vmem:[%s2 + $0x60] sm:$0xf]
    %v69 = vld [vmem:[%s2 + $0x64] sm:$0xf]
    %v70 = vld [vmem:[%s2 + $0x68] sm:$0xf]
    %v71 = vld [vmem:[%s2 + $0x6c] sm:$0xf]
    %v72 = vld [vmem:[%s2 + $0x70] sm:$0xf]
    %v73 = vld [vmem:[%s2 + $0x74] sm:$0xf]
    %v74 = vld [vmem:[%s2 + $0x78] sm:$0xf]
    %v75 = vld [vmem:[%s2 + $0x7c] sm:$0xf]
    %v76 = vld [vmem:[%s2 + $0x80] sm:$0xf]
    %v77 = vld [vmem:[%s2 + $0x84] sm:$0xf]
    %v78 = vld [vmem:[%s2 + $0x88] sm:$0xf]
    %v79 = vld [vmem:[%s2 + $0x8c] sm:$0xf]
    %v80 = vld [vmem:[%s2 + $0x90] sm:$0xf]
    %v81 = vld [vmem:[%s2 + $0x94] sm:$0xf]
    %v82 = vld [vmem:[%s2 + $0x98] sm:$0xf]
    %v83 = vld [vmem:[%s2 + $0x9c] sm:$0xf]
    %v84 = vld [vmem:[%s2 + $0xa0] sm:$0xf]
    %v85 = vld [vmem:[%s2 + $0xa4] sm:$0xf]
    %v86 = vld [vmem:[%s2 + $0xa8] sm:$0xf]
    %v87 = vld [vmem:[%s2 + $0xac] sm:$0xf]
    %v88 = vld [vmem:[%s2 + $0xb0] sm:$0xf]
    %v89 = vld [vmem:[%s2 + $0xb4] sm:$0xf]
    %v90 = vld [vmem:[%s2 + $0xb8] sm:$0xf]
    %v91 = vld [vmem:[%s2 + $0xbc] sm:$0xf]
    %v92 = vld [vmem:[%s3] sm:$0x1]
    %v94 = vperm.slane %v92, 0
    %v100 = vunpack.c.l.b16 %v40
    %v101 = vunpack.c.h.b16 %v40
    %v102 = vunpack.c.l.b16 %v41
    %v103 = vunpack.c.l.b16 %v42
    %v104 = vunpack.c.h.b16 %v42
    %v105 = vunpack.c.l.b16 %v43
    %v106 = vpack.c.b16 %v103, %v100
    %v107 = vpack.c.b16 %v104, %v101
    %v108 = vpack.c.b16 %v105, %v102
    %v160 = vunpack.c.l.b16 %v44
    %v161 = vunpack.c.l.b16 %v45
    %v162 = vunpack.c.l.b16 %v46
    %v163 = vunpack.c.l.b16 %v47
    %v164 = vunpack.c.l.b16 %v48
    %v165 = vunpack.c.l.b16 %v49
    %v166 = vunpack.c.l.b16 %v50
    %v167 = vunpack.c.l.b16 %v51
    %v168 = vunpack.c.l.b16 %v52
    %v169 = vunpack.c.l.b16 %v53
    %v170 = vunpack.c.l.b16 %v54
    %v171 = vunpack.c.l.b16 %v55
    %v172 = vunpack.c.l.b16 %v56
    %v173 = vunpack.c.l.b16 %v57
    %v174 = vunpack.c.l.b16 %v58
    %v175 = vunpack.c.l.b16 %v59
    %v176 = vunpack.c.l.b16 %v60
    %v177 = vunpack.c.l.b16 %v61
    %v178 = vunpack.c.l.b16 %v62
    %v179 = vunpack.c.l.b16 %v63
    %v180 = vunpack.c.l.b16 %v64
    %v181 = vunpack.c.l.b16 %v65
    %v182 = vunpack.c.l.b16 %v66
    %v183 = vunpack.c.l.b16 %v67
    %v184 = vunpack.c.l.b16 %v68
    %v185 = vunpack.c.l.b16 %v69
    %v186 = vunpack.c.l.b16 %v70
    %v187 = vunpack.c.l.b16 %v71
    %v188 = vunpack.c.l.b16 %v72
    %v189 = vunpack.c.l.b16 %v73
    %v190 = vunpack.c.l.b16 %v74
    %v191 = vunpack.c.l.b16 %v75
    %v192 = vunpack.c.l.b16 %v76
    %v193 = vunpack.c.l.b16 %v77
    %v194 = vunpack.c.l.b16 %v78
    %v195 = vunpack.c.l.b16 %v79
    %v196 = vunpack.c.l.b16 %v80
    %v197 = vunpack.c.l.b16 %v81
    %v198 = vunpack.c.l.b16 %v82
    %v199 = vunpack.c.l.b16 %v83
    %v200 = vunpack.c.l.b16 %v84
    %v201 = vunpack.c.l.b16 %v85
    %v202 = vunpack.c.l.b16 %v86
    %v203 = vunpack.c.l.b16 %v87
    %v204 = vunpack.c.l.b16 %v88
    %v205 = vunpack.c.l.b16 %v89
    %v206 = vunpack.c.l.b16 %v90
    %v207 = vunpack.c.l.b16 %v91
    %v208 = vpack.c.b16 %v161, %v160
    %v209 = vpack.c.b16 %v163, %v162
    %v210 = vpack.c.b16 %v165, %v164
    %v211 = vpack.c.b16 %v167, %v166
    %v212 = vpack.c.b16 %v169, %v168
    %v213 = vpack.c.b16 %v171, %v170
    %v214 = vpack.c.b16 %v173, %v172
    %v215 = vpack.c.b16 %v175, %v174
    %v216 = vpack.c.b16 %v177, %v176
    %v217 = vpack.c.b16 %v179, %v178
    %v218 = vpack.c.b16 %v181, %v180
    %v219 = vpack.c.b16 %v183, %v182
    %v220 = vpack.c.b16 %v185, %v184
    %v221 = vpack.c.b16 %v187, %v186
    %v222 = vpack.c.b16 %v189, %v188
    %v223 = vpack.c.b16 %v191, %v190
    %v224 = vpack.c.b16 %v193, %v192
    %v225 = vpack.c.b16 %v195, %v194
    %v226 = vpack.c.b16 %v197, %v196
    %v227 = vpack.c.b16 %v199, %v198
    %v228 = vpack.c.b16 %v201, %v200
    %v229 = vpack.c.b16 %v203, %v202
    %v230 = vpack.c.b16 %v205, %v204
    %v231 = vpack.c.b16 %v207, %v206
    %256 = vmatpush.bf16.msra.mxu0 %v215
    %257 = vmatpush.bf16.msra.mxu0 %v214
    %258 = vmatpush.bf16.msra.mxu0 %v213
    %259 = vmatpush.bf16.msra.mxu0 %v212
    %260 = vmatpush.bf16.msra.mxu0 %v211
    %261 = vmatpush.bf16.msra.mxu0 %v210
    %262 = vmatpush.bf16.msra.mxu0 %v209
    %263 = vmatpush.bf16.msra.mxu0 %v208
    %264 = vmatmul.bf16.gmra.mxu0 %v106
    %v265 = vpop.f32.mrf.mxu0
    %v266 = vadd.f32 %v94, %v265
    %v267 = vpop.f32.mrf.mxu0
    %v268 = vadd.f32 %v94, %v267
    %269 = vdwg.mxu0
    %270 = vmatpush.bf16.msra.mxu0 %v223
    %271 = vmatpush.bf16.msra.mxu0 %v222
    %272 = vmatpush.bf16.msra.mxu0 %v221
    %273 = vmatpush.bf16.msra.mxu0 %v220
    %274 = vmatpush.bf16.msra.mxu0 %v219
    %275 = vmatpush.bf16.msra.mxu0 %v218
    %276 = vmatpush.bf16.msra.mxu0 %v217
    %277 = vmatpush.bf16.msra.mxu0 %v216
    %278 = vmatmul.bf16.gmra.mxu0 %v107
    %v279 = vpop.f32.mrf.mxu0
    %v280 = vadd.f32 %v266, %v279
    %v281 = vpop.f32.mrf.mxu0
    %v282 = vadd.f32 %v268, %v281
    %283 = vdwg.mxu0
    %284 = vmatpush.bf16.msra.mxu0 %v231
    %285 = vmatpush.bf16.msra.mxu0 %v230
    %286 = vmatpush.bf16.msra.mxu0 %v229
    %287 = vmatpush.bf16.msra.mxu0 %v228
    %288 = vmatpush.bf16.msra.mxu0 %v227
    %289 = vmatpush.bf16.msra.mxu0 %v226
    %290 = vmatpush.bf16.msra.mxu0 %v225
    %291 = vmatpush.bf16.msra.mxu0 %v224
    %292 = vmatmul.bf16.gmra.mxu0 %v108
    %v293 = vpop.f32.mrf.mxu0
    %v294 = vadd.f32 %v280, %v293
    %v295 = vpop.f32.mrf.mxu0
    %v296 = vadd.f32 %v282, %v295
    %297 = vdwg.mxu0
    %v298 = vmul.f32 %v294, 0.5
    %v299 = vmul.f32 %v296, 0.5
    %v300 = vmul.f32 %v294, 0.044715
    %v301 = vmul.f32 %v296, 0.044715
    %v302 = vmul.f32 %v300, %v294
    %v303 = vmul.f32 %v301, %v296
    %v304 = vmul.f32 %v302, %v294
    %v305 = vmul.f32 %v303, %v296
    %v306 = vadd.f32 %v294, %v304
    %v307 = vadd.f32 %v296, %v305
    %v308 = vmul.f32 %v306, 0.7978846
    %v309 = vmul.f32 %v307, 0.7978846
    %v310 = vtanh.pop %v308
    %v311 = vtanh.pop %v309
    %v312 = vadd.f32 %v310, 1.0
    %v313 = vadd.f32 %v311, 1.0
    %v314 = vmul.f32 %v298, %v312
    %v315 = vmul.f32 %v299, %v313
    %v316 = vld [vmem:[%s0] sm:$0xff]
    %v317 = vld [vmem:[%s0 + $0x8] sm:$0xff]
    %v318 = vld [vmem:[%s4] sm:$0xf]
    %v319 = vld [vmem:[%s4 + $0x4] sm:$0xf]
    %v320 = vld [vmem:[%s4 + $0x8] sm:$0xf]
    %v321 = vld [vmem:[%s4 + $0xc] sm:$0xf]
    %v322 = vld [vmem:[%s4 + $0x10] sm:$0xf]
    %v323 = vld [vmem:[%s4 + $0x14] sm:$0xf]
    %v324 = vld [vmem:[%s4 + $0x18] sm:$0xf]
    %v325 = vld [vmem:[%s4 + $0x1c] sm:$0xf]
    %v326 = vld [vmem:[%s4 + $0x20] sm:$0xf]
    %v327 = vld [vmem:[%s4 + $0x24] sm:$0xf]
    %v328 = vld [vmem:[%s4 + $0x28] sm:$0xf]
    %v329 = vld [vmem:[%s4 + $0x2c] sm:$0xf]
    %v330 = vld [vmem:[%s4 + $0x30] sm:$0xf]
    %v331 = vld [vmem:[%s4 + $0x34] sm:$0xf]
    %v332 = vld [vmem:[%s4 + $0x38] sm:$0xf]
    %v333 = vld [vmem:[%s4 + $0x3c] sm:$0xf]
    %v334 = vld [vmem:[%s4 + $0x40] sm:$0xf]
    %v335 = vld [vmem:[%s4 + $0x44] sm:$0xf]
    %v336 = vld [vmem:[%s4 + $0x48] sm:$0xf]
    %v337 = vld [vmem:[%s4 + $0x4c] sm:$0xf]
    %v338 = vld [vmem:[%s4 + $0x50] sm:$0xf]
    %v339 = vld [vmem:[%s4 + $0x54] sm:$0xf]
    %v340 = vld [vmem:[%s4 + $0x58] sm:$0xf]
    %v341 = vld [vmem:[%s4 + $0x5c] sm:$0xf]
    %v342 = vpack.c.bf16 %v315, %v314
    %v343 = vld [vmem:[%s5] sm:$0xf]
    %v344 = vld [vmem:[%s5 + $0x4] sm:$0xf]
    %v345 = vld [vmem:[%s5 + $0x8] sm:$0xf]
    %v346 = vld [vmem:[%s5 + $0xc] sm:$0xf]
    %v347 = vld [vmem:[%s5 + $0x10] sm:$0xf]
    %v348 = vld [vmem:[%s5 + $0x14] sm:$0xf]
    %v349 = vld [vmem:[%s5 + $0x18] sm:$0xf]
    %v350 = vld [vmem:[%s5 + $0x1c] sm:$0xf]
    %v359 = vunpack.c.l.b16 %v343
    %v360 = vunpack.c.l.b16 %v344
    %v361 = vunpack.c.l.b16 %v345
    %v362 = vunpack.c.l.b16 %v346
    %v363 = vunpack.c.l.b16 %v347
    %v364 = vunpack.c.l.b16 %v348
    %v365 = vunpack.c.l.b16 %v349
    %v366 = vunpack.c.l.b16 %v350
    %v367 = vpack.c.b16 %v360, %v359
    %v368 = vpack.c.b16 %v362, %v361
    %v369 = vpack.c.b16 %v364, %v363
    %v370 = vpack.c.b16 %v366, %v365
    %vm375 = vcmask 523264
    %v377 = vsel %vm375, %v342, 0
    %379 = vmatpush.bf16.msra.mxu0 0
    %380 = vmatpush.bf16.msra.mxu0 0
    %381 = vmatpush.bf16.msra.mxu0 0
    %382 = vmatpush.bf16.msra.mxu0 0
    %383 = vmatpush.bf16.msra.mxu0 %v370
    %384 = vmatpush.bf16.msra.mxu0 %v369
    %385 = vmatpush.bf16.msra.mxu0 %v368
    %386 = vmatpush.bf16.msra.mxu0 %v367
    %387 = vmatmul.bf16.gmra.mxu0 %v377
    %v388 = vpop.f32.mrf.mxu0
    %v389 = vadd.f32 0.0, %v388
    %v390 = vpop.f32.mrf.mxu0
    %v391 = vadd.f32 0.0, %v390
    %392 = vdwg.mxu0
    %v395 = vunpack.c.l.b16 %v316
    %v396 = vunpack.c.h.b16 %v316
    %v397 = vunpack.c.l.b16 %v317
    %v398 = vunpack.c.h.b16 %v317
    %v399 = vpack.c.b16 %v397, %v395
    %v400 = vpack.c.b16 %v398, %v396
    %v426 = vunpack.c.l.b16 %v318
    %v427 = vunpack.c.l.b16 %v319
    %v428 = vunpack.c.l.b16 %v320
    %v429 = vunpack.c.l.b16 %v321
    %v430 = vunpack.c.l.b16 %v322
    %v431 = vunpack.c.l.b16 %v323
    %v432 = vunpack.c.l.b16 %v324
    %v433 = vunpack.c.l.b16 %v325
    %v434 = vunpack.c.l.b16 %v326
    %v435 = vunpack.c.l.b16 %v327
    %v436 = vunpack.c.l.b16 %v328
    %v437 = vunpack.c.l.b16 %v329
    %v438 = vunpack.c.l.b16 %v330
    %v439 = vunpack.c.l.b16 %v331
    %v440 = vunpack.c.l.b16 %v332
    %v441 = vunpack.c.l.b16 %v333
    %v442 = vunpack.c.l.b16 %v334
    %v443 = vunpack.c.l.b16 %v335
    %v444 = vunpack.c.l.b16 %v336
    %v445 = vunpack.c.l.b16 %v337
    %v446 = vunpack.c.l.b16 %v338
    %v447 = vunpack.c.l.b16 %v339
    %v448 = vunpack.c.l.b16 %v340
    %v449 = vunpack.c.l.b16 %v341
    %v450 = vpack.c.b16 %v427, %v426
    %v451 = vpack.c.b16 %v429, %v428
    %v452 = vpack.c.b16 %v431, %v430
    %v453 = vpack.c.b16 %v433, %v432
    %v454 = vpack.c.b16 %v435, %v434
    %v455 = vpack.c.b16 %v437, %v436
    %v456 = vpack.c.b16 %v439, %v438
    %v457 = vpack.c.b16 %v441, %v440
    %v458 = vpack.c.b16 %v443, %v442
    %v459 = vpack.c.b16 %v445, %v444
    %v460 = vpack.c.b16 %v447, %v446
    %v461 = vpack.c.b16 %v449, %v448
    %v475 = vsel %vm375, %v400, 0
    %477 = vmatpush.bf16.msra.mxu0 %v457
    %478 = vmatpush.bf16.msra.mxu0 %v456
    %479 = vmatpush.bf16.msra.mxu0 %v455
    %480 = vmatpush.bf16.msra.mxu0 %v454
    %481 = vmatpush.bf16.msra.mxu0 %v453
    %482 = vmatpush.bf16.msra.mxu0 %v452
    %483 = vmatpush.bf16.msra.mxu0 %v451
    %484 = vmatpush.bf16.msra.mxu0 %v450
    %485 = vmatmul.bf16.gmra.mxu0 %v399
    %v486 = vpop.f32.mrf.mxu0
    %v487 = vadd.f32 %v389, %v486
    %v488 = vpop.f32.mrf.mxu0
    %v489 = vadd.f32 %v391, %v488
    %490 = vdwg.mxu0
    %491 = vmatpush.bf16.msra.mxu0 0
    %492 = vmatpush.bf16.msra.mxu0 0
    %493 = vmatpush.bf16.msra.mxu0 0
    %494 = vmatpush.bf16.msra.mxu0 0
    %495 = vmatpush.bf16.msra.mxu0 %v461
    %496 = vmatpush.bf16.msra.mxu0 %v460
    %497 = vmatpush.bf16.msra.mxu0 %v459
    %498 = vmatpush.bf16.msra.mxu0 %v458
    %499 = vmatmul.bf16.gmra.mxu0 %v475
    %v500 = vpop.f32.mrf.mxu0
    %v501 = vadd.f32 %v487, %v500
    %v502 = vpop.f32.mrf.mxu0
    %v503 = vadd.f32 %v489, %v502
    %504 = vdwg.mxu0
    %v505 = vld [vmem:[%s6] sm:$0x1]
    %v507 = vperm.slane %v505, 0
    %v509 = vadd.f32 %v501, %v507
    %v510 = vadd.f32 %v503, %v507
    %511 = vadd.xlane.f32.xlu0 %v509
    %v512 = vpop.xlane.xlu0 %511
    %513 = vadd.xlane.f32.xlu0 %v510
    %v514 = vpop.xlane.xlu0 %513
    %v515 = vrcp.pop 128.0
    %v516 = vmul.f32 128.0, %v515
    %v517 = vsub.f32 1.0, %v516
    %v518 = vmul.f32 %v515, %v517
    %v519 = vadd.f32 %v515, %v518
    %vm520 = vweird.f32 %v515
    %v521 = vsel %vm520, %v515, %v519
    %v522 = vmul.f32 %v512, %v521
    %v523 = vmul.f32 %v514, %v521
    %v524 = vsub.f32 %v509, %v522
    %v525 = vsub.f32 %v510, %v523
    %v526 = vmul.f32 %v524, %v524
    %v527 = vmul.f32 %v525, %v525
    %528 = vadd.xlane.f32.xlu0 %v526
    %v529 = vpop.xlane.xlu0 %528
    %530 = vadd.xlane.f32.xlu0 %v527
    %v531 = vpop.xlane.xlu0 %530
    %v532 = vmul.f32 %v529, %v521
    %v533 = vmul.f32 %v531, %v521
    %v534 = vadd.f32 %v532, 1e-05
    %v535 = vadd.f32 %v533, 1e-05
    %v536 = vrsqrt.pop %v534
    %v537 = vmul.f32 %v536, %v534
    %v538 = vmul.f32 %v537, %v536
    %v539 = vmul.f32 0.5, %v538
    %v540 = vsub.f32 1.5, %v539
    %v541 = vmul.f32 %v536, %v540
    %vm542 = vweird.f32 %v534
    %vm543 = vweird.f32 %v536
    %vm544 = vmor %vm542, %vm543
    %v545 = vsel %vm544, %v536, %v541
    %v546 = vrsqrt.pop %v535
    %v547 = vmul.f32 %v546, %v535
    %v548 = vmul.f32 %v547, %v546
    %v549 = vmul.f32 0.5, %v548
    %v550 = vsub.f32 1.5, %v549
    %v551 = vmul.f32 %v546, %v550
    %vm552 = vweird.f32 %v535
    %vm553 = vweird.f32 %v546
    %vm554 = vmor %vm552, %vm553
    %v555 = vsel %vm554, %v546, %v551
    %v556 = vmul.f32 %v524, %v545
    %v557 = vmul.f32 %v525, %v555
    %v558 = vmul.f32 %v556, 0.5
    %v559 = vmul.f32 %v557, 0.5
    %v560 = vmul.f32 %v556, 0.044715
    %v561 = vmul.f32 %v557, 0.044715
    %v562 = vmul.f32 %v560, %v556
    %v563 = vmul.f32 %v561, %v557
    %v564 = vmul.f32 %v562, %v556
    %v565 = vmul.f32 %v563, %v557
    %v566 = vadd.f32 %v556, %v564
    %v567 = vadd.f32 %v557, %v565
    %v568 = vmul.f32 %v566, 0.7978846
    %v569 = vmul.f32 %v567, 0.7978846
    %v570 = vtanh.pop %v568
    %v571 = vtanh.pop %v569
    %v572 = vadd.f32 %v570, 1.0
    %v573 = vadd.f32 %v571, 1.0
    %v574 = vmul.f32 %v558, %v572
    %v575 = vmul.f32 %v559, %v573
    %v576 = vpack.c.bf16 %v575, %v574
    %v577 = vld [vmem:[%s7] sm:$0xf]
    %v578 = vld [vmem:[%s7 + $0x4] sm:$0xf]
    %v579 = vld [vmem:[%s7 + $0x8] sm:$0xf]
    %v580 = vld [vmem:[%s7 + $0xc] sm:$0xf]
    %v581 = vld [vmem:[%s7 + $0x10] sm:$0xf]
    %v582 = vld [vmem:[%s7 + $0x14] sm:$0xf]
    %v583 = vld [vmem:[%s7 + $0x18] sm:$0xf]
    %v584 = vld [vmem:[%s7 + $0x1c] sm:$0xf]
    %v585 = vld [vmem:[%s7 + $0x20] sm:$0xf]
    %v586 = vld [vmem:[%s7 + $0x24] sm:$0xf]
    %v587 = vld [vmem:[%s7 + $0x28] sm:$0xf]
    %v588 = vld [vmem:[%s7 + $0x2c] sm:$0xf]
    %v589 = vld [vmem:[%s7 + $0x30] sm:$0xf]
    %v590 = vld [vmem:[%s7 + $0x34] sm:$0xf]
    %v591 = vld [vmem:[%s7 + $0x38] sm:$0xf]
    %v592 = vld [vmem:[%s7 + $0x3c] sm:$0xf]
    %v593 = vld [vmem:[%s8] sm:$0x1]
    %v595 = vperm.slane %v593, 0
    %v613 = vunpack.c.l.b16 %v577
    %v614 = vunpack.c.l.b16 %v578
    %v615 = vunpack.c.l.b16 %v579
    %v616 = vunpack.c.l.b16 %v580
    %v617 = vunpack.c.l.b16 %v581
    %v618 = vunpack.c.l.b16 %v582
    %v619 = vunpack.c.l.b16 %v583
    %v620 = vunpack.c.l.b16 %v584
    %v621 = vunpack.c.l.b16 %v585
    %v622 = vunpack.c.l.b16 %v586
    %v623 = vunpack.c.l.b16 %v587
    %v624 = vunpack.c.l.b16 %v588
    %v625 = vunpack.c.l.b16 %v589
    %v626 = vunpack.c.l.b16 %v590
    %v627 = vunpack.c.l.b16 %v591
    %v628 = vunpack.c.l.b16 %v592
    %v629 = vpack.c.b16 %v614, %v613
    %v630 = vpack.c.b16 %v616, %v615
    %v631 = vpack.c.b16 %v618, %v617
    %v632 = vpack.c.b16 %v620, %v619
    %v633 = vpack.c.b16 %v622, %v621
    %v634 = vpack.c.b16 %v624, %v623
    %v635 = vpack.c.b16 %v626, %v625
    %v636 = vpack.c.b16 %v628, %v627
    %645 = vmatpush.bf16.msra.mxu0 %v636
    %646 = vmatpush.bf16.msra.mxu0 %v635
    %647 = vmatpush.bf16.msra.mxu0 %v634
    %648 = vmatpush.bf16.msra.mxu0 %v633
    %649 = vmatpush.bf16.msra.mxu0 %v632
    %650 = vmatpush.bf16.msra.mxu0 %v631
    %651 = vmatpush.bf16.msra.mxu0 %v630
    %652 = vmatpush.bf16.msra.mxu0 %v629
    %653 = vmatmul.bf16.gmra.mxu0 %v576
    %v654 = vpop.f32.mrf.mxu0
    %v655 = vadd.f32 %v595, %v654
    %v656 = vpop.f32.mrf.mxu0
    %v657 = vadd.f32 %v595, %v656
    %658 = vdwg.mxu0
    %v659 = vsel %vm375, %v655, 0.0
    %660 = vadd.xlane.f32.xlu0 %v659
    %v661 = vpop.xlane.xlu0 %660
    %v662 = vsel %vm375, %v657, 0.0
    %663 = vadd.xlane.f32.xlu0 %v662
    %v664 = vpop.xlane.xlu0 %663
    %v665 = vrcp.pop 64.0
    %v666 = vmul.f32 64.0, %v665
    %v667 = vsub.f32 1.0, %v666
    %v668 = vmul.f32 %v665, %v667
    %v669 = vadd.f32 %v665, %v668
    %vm670 = vweird.f32 %v665
    %v671 = vsel %vm670, %v665, %v669
    %v672 = vmul.f32 %v661, %v671
    %v673 = vmul.f32 %v664, %v671
    %v674 = vsub.f32 %v655, %v672
    %v675 = vsub.f32 %v657, %v673
    %v676 = vmul.f32 %v674, %v674
    %v677 = vmul.f32 %v675, %v675
    %v678 = vsel %vm375, %v676, 0.0
    %679 = vadd.xlane.f32.xlu0 %v678
    %v680 = vpop.xlane.xlu0 %679
    %v681 = vsel %vm375, %v677, 0.0
    %682 = vadd.xlane.f32.xlu0 %v681
    %v683 = vpop.xlane.xlu0 %682
    %v684 = vmul.f32 %v680, %v671
    %v685 = vmul.f32 %v683, %v671
    %v686 = vadd.f32 %v684, 1e-05
    %v687 = vadd.f32 %v685, 1e-05
    %v688 = vrsqrt.pop %v686
    %v689 = vmul.f32 %v688, %v686
    %v690 = vmul.f32 %v689, %v688
    %v691 = vmul.f32 0.5, %v690
    %v692 = vsub.f32 1.5, %v691
    %v693 = vmul.f32 %v688, %v692
    %vm694 = vweird.f32 %v686
    %vm695 = vweird.f32 %v688
    %vm696 = vmor %vm694, %vm695
    %v697 = vsel %vm696, %v688, %v693
    %v698 = vrsqrt.pop %v687
    %v699 = vmul.f32 %v698, %v687
    %v700 = vmul.f32 %v699, %v698
    %v701 = vmul.f32 0.5, %v700
    %v702 = vsub.f32 1.5, %v701
    %v703 = vmul.f32 %v698, %v702
    %vm704 = vweird.f32 %v687
    %vm705 = vweird.f32 %v698
    %vm706 = vmor %vm704, %vm705
    %v707 = vsel %vm706, %v698, %v703
    %v708 = vmul.f32 %v674, %v697
    %v709 = vmul.f32 %v675, %v707
    %v710 = vmul.f32 %v708, 0.5
    %v711 = vmul.f32 %v709, 0.5
    %v712 = vmul.f32 %v708, 0.044715
    %v713 = vmul.f32 %v709, 0.044715
    %v714 = vmul.f32 %v712, %v708
    %v715 = vmul.f32 %v713, %v709
    %v716 = vmul.f32 %v714, %v708
    %v717 = vmul.f32 %v715, %v709
    %v718 = vadd.f32 %v708, %v716
    %v719 = vadd.f32 %v709, %v717
    %v720 = vmul.f32 %v718, 0.7978846
    %v721 = vmul.f32 %v719, 0.7978846
    %v722 = vtanh.pop %v720
    %v723 = vtanh.pop %v721
    %v724 = vadd.f32 %v722, 1.0
    %v725 = vadd.f32 %v723, 1.0
    %v726 = vmul.f32 %v710, %v724
    %v727 = vmul.f32 %v711, %v725
    %v728 = vpack.c.bf16 %v727, %v726
    %v729 = vld [vmem:[%s9] sm:$0xf]
    %v730 = vld [vmem:[%s9 + $0x4] sm:$0xf]
    %v731 = vld [vmem:[%s9 + $0x8] sm:$0xf]
    %v732 = vld [vmem:[%s9 + $0xc] sm:$0xf]
    %v733 = vld [vmem:[%s9 + $0x10] sm:$0xf]
    %v734 = vld [vmem:[%s9 + $0x14] sm:$0xf]
    %v735 = vld [vmem:[%s9 + $0x18] sm:$0xf]
    %v736 = vld [vmem:[%s9 + $0x1c] sm:$0xf]
    %v737 = vld [vmem:[%s10] sm:$0x1]
    %v739 = vperm.slane %v737, 0
    %v749 = vunpack.c.l.b16 %v729
    %v750 = vunpack.c.l.b16 %v730
    %v751 = vunpack.c.l.b16 %v731
    %v752 = vunpack.c.l.b16 %v732
    %v753 = vunpack.c.l.b16 %v733
    %v754 = vunpack.c.l.b16 %v734
    %v755 = vunpack.c.l.b16 %v735
    %v756 = vunpack.c.l.b16 %v736
    %v757 = vpack.c.b16 %v750, %v749
    %v758 = vpack.c.b16 %v752, %v751
    %v759 = vpack.c.b16 %v754, %v753
    %v760 = vpack.c.b16 %v756, %v755
    %v766 = vsel %vm375, %v728, 0
    %768 = vmatpush.bf16.msra.mxu0 0
    %769 = vmatpush.bf16.msra.mxu0 0
    %770 = vmatpush.bf16.msra.mxu0 0
    %771 = vmatpush.bf16.msra.mxu0 0
    %772 = vmatpush.bf16.msra.mxu0 %v760
    %773 = vmatpush.bf16.msra.mxu0 %v759
    %774 = vmatpush.bf16.msra.mxu0 %v758
    %775 = vmatpush.bf16.msra.mxu0 %v757
    %776 = vmatmul.bf16.gmra.mxu0 %v766
    %v777 = vpop.f32.mrf.mxu0
    %v778 = vadd.f32 %v739, %v777
    %v779 = vpop.f32.mrf.mxu0
    %v780 = vadd.f32 %v739, %v779
    %781 = vdwg.mxu0
    %v782 = vmul.f32 %v778, 0.5
    %v783 = vmul.f32 %v780, 0.5
    %v784 = vmul.f32 %v778, 0.044715
    %v785 = vmul.f32 %v780, 0.044715
    %v786 = vmul.f32 %v784, %v778
    %v787 = vmul.f32 %v785, %v780
    %v788 = vmul.f32 %v786, %v778
    %v789 = vmul.f32 %v787, %v780
    %v790 = vadd.f32 %v778, %v788
    %v791 = vadd.f32 %v780, %v789
    %v792 = vmul.f32 %v790, 0.7978846
    %v793 = vmul.f32 %v791, 0.7978846
    %v794 = vtanh.pop %v792
    %v795 = vtanh.pop %v793
    %v796 = vadd.f32 %v794, 1.0
    %v797 = vadd.f32 %v795, 1.0
    %v798 = vmul.f32 %v782, %v796
    %v799 = vmul.f32 %v783, %v797
    %800 = vst [vmem:[#allocation2] sm:$0xff] %v798
    %801 = vst [vmem:[#allocation2 + $0x8] sm:$0xff] %v799
    // Predicated region
    $region46: #{tpu_custom_call.1} parent=1 // pred_check
      _
    $region47: #{tpu_custom_call.1} parent=1 // pred_check_branch
      %803 = sbr.rel (0) target = $region49
    $region48: #{tpu_custom_call.1} parent=1 // pred_region
      %805 = vsyncadd [#allocation3], 0
      %s806 = sshll.u32 [#allocation2], 4
      %s807 = int_to_ptr.vmem [resolvable:$true] %s806
      %s808 = sshll.u32 %s11, 4
      %s809 = int_to_ptr.hbm [resolvable:$true] %s808
      %814 = dma.vmem_to_hbm [thread:$0]  %s807, 256, %s809, [#allocation3], 128, 128, 8
    $region49: #{tpu_custom_call.1} parent=1 // pred_fallthru
      _
    // Predicated region
    $region50: #{tpu_custom_call.1} parent=1 // pred_check
      _
    $region51: #{tpu_custom_call.1} parent=1 // pred_check_branch
      %816 = sbr.rel (0) target = $region53
    $region52: #{tpu_custom_call.1} parent=1 // pred_region
      %818 = dma.done [#allocation3], 256
    $region53: #{tpu_custom_call.1} parent=1 // pred_fallthru
      _
    %819 = vsyncpa [#allocation3], 1

</llo_original>
